<compile_context>
chip_gen: v6e
topology: v6e:2x2x1
jax: 0.10.0
libtpu: 0.0.40
codegen_flags: <defaults>
</compile_context>

<pallas_src>
import functools

import jax
import jax.numpy as jnp
from jax.experimental import pallas as pl
from jax.experimental.pallas import tpu as pltpu

_LANE = 128
_SUBLANE = 8
_DEFAULT_MAX_BLOCK_BYTES = 8 * 1024 * 1024  # per pipelined block copy


def _round_up(x, m):
    return (x + m - 1) // m * m


# --------------------------------------------------------------------------
# Path A: fused, activation-resident kernel (Bt whole images per grid step)
# --------------------------------------------------------------------------
def _se_fused_kernel(x_ref, w1_ref, w2_ref, o_ref, *, inv_hw):
    # x_ref: (Bt, C, HW); w1_ref: (C//r, C); w2_ref: (C, C//r)
    xb = x_ref[...]

    # squeeze: global average pool over the spatial lanes (Mosaic masks the
    # padded lanes of a ragged last dim, so the sum is exact).
    m = jnp.sum(xb.astype(jnp.float32), axis=2) * inv_hw            # (Bt, C)

    # excitation: fc1 -> ReLU -> fc2 -> sigmoid (batched over Bt)
    h = jnp.maximum(
        jnp.einsum("bc,rc->br", m, w1_ref[...],
                   preferred_element_type=jnp.float32), 0.0)        # (Bt, C//r)
    s = jax.nn.sigmoid(
        jnp.einsum("br,cr->bc", h, w2_ref[...],
                   preferred_element_type=jnp.float32))             # (Bt, C)

    # scale: broadcast per-(batch, channel) factor over HW lanes
    o_ref[...] = xb * s.astype(xb.dtype)[:, :, None]


def _se_fused(x3, w1, w2, bt):
    b, c, hw = x3.shape
    itemsize = jnp.dtype(x3.dtype).itemsize
    block_bytes = bt * _round_up(c, _SUBLANE) * _round_up(hw, _LANE) * itemsize
    w_bytes = int(w1.size + w2.size) * jnp.dtype(w1.dtype).itemsize
    need = 4 * block_bytes + 2 * w_bytes + (2 << 20)
    vmem_limit = int(min(max(need, 32 << 20), 64 << 20))

    kernel = functools.partial(_se_fused_kernel, inv_hw=1.0 / hw)
    return pl.pallas_call(
        kernel,
        out_shape=jax.ShapeDtypeStruct((b, c, hw), x3.dtype),
        grid_spec=pltpu.PrefetchScalarGridSpec(
            num_scalar_prefetch=0,
            grid=(b // bt,),
            in_specs=[
                pl.BlockSpec((bt, c, hw), lambda i: (i, 0, 0)),
                pl.BlockSpec(w1.shape, lambda i: (0, 0)),
                pl.BlockSpec(w2.shape, lambda i: (0, 0)),
            ],
            out_specs=pl.BlockSpec((bt, c, hw), lambda i: (i, 0, 0)),
        ),
        compiler_params=pltpu.CompilerParams(
            dimension_semantics=("parallel",),
            vmem_limit_bytes=vmem_limit),
    )(x3, w1, w2)


# --------------------------------------------------------------------------
# Path B: streamed two-pass kernels (one image too large to hold resident)
# --------------------------------------------------------------------------
def _se_squeeze_kernel(x_ref, w1_ref, w2_ref, s_ref, *, inv_hw, hw_true, thw):
    # grid = (B, n_hw_tiles).  Accumulate per-channel sums across HW tiles;
    # on the last tile turn the sum into the sigmoid excitation scale.
    ti = pl.program_id(1)
    nt = pl.num_programs(1)

    @pl.when(ti == 0)
    def _():
        s_ref[...] = jnp.zeros_like(s_ref)

    xb = x_ref[...].astype(jnp.float32)                              # (1, C, thw)
    # Mask lanes past the true HW (the last tile may read out-of-bounds data).
    lane = jax.lax.broadcasted_iota(jnp.int32, xb.shape, 2) + ti * thw
    xb = jnp.where(lane < hw_true, xb, 0.0)
    s_ref[...] += jnp.sum(xb, axis=2, keepdims=True)                 # (1, C, 1)

    @pl.when(ti == nt - 1)
    def _():
        m = s_ref[0] * inv_hw                                        # (C, 1)
        h = jnp.maximum(
            jnp.dot(w1_ref[...], m, preferred_element_type=jnp.float32), 0.0)
        s_ref[0] = jax.nn.sigmoid(
            jnp.dot(w2_ref[...], h, preferred_element_type=jnp.float32))


def _se_scale_kernel(s_ref, x_ref, o_ref):
    xb = x_ref[0]                                                    # (C, thw)
    o_ref[0] = xb * s_ref[0].astype(xb.dtype)                        # (C,1) bcast


def _se_streamed(x3, w1, w2, thw):
    b, c, hw = x3.shape
    n_t = pl.cdiv(hw, thw)
    itemsize = jnp.dtype(x3.dtype).itemsize
    tile_bytes = _round_up(c, _SUBLANE) * thw * itemsize
    w_bytes = int(w1.size + w2.size) * jnp.dtype(w1.dtype).itemsize
    vmem_limit = int(min(max(4 * tile_bytes + 2 * w_bytes + (2 << 20), 32 << 20),
                         64 << 20))

    # Pass 1: per-image sums over spatial tiles -> excitation scale (B, C, 1).
    squeeze = functools.partial(_se_squeeze_kernel,
                                inv_hw=1.0 / hw, hw_true=hw, thw=thw)
    scales = pl.pallas_call(
        squeeze,
        out_shape=jax.ShapeDtypeStruct((b, c, 1), jnp.float32),
        grid_spec=pltpu.PrefetchScalarGridSpec(
            num_scalar_prefetch=0,
            grid=(b, n_t),
            in_specs=[
                pl.BlockSpec((1, c, thw), lambda bi, ti: (bi, 0, ti)),
                pl.BlockSpec(w1.shape, lambda bi, ti: (0, 0)),
                pl.BlockSpec(w2.shape, lambda bi, ti: (0, 0)),
            ],
            out_specs=pl.BlockSpec((1, c, 1), lambda bi, ti: (bi, 0, 0)),
        ),
        compiler_params=pltpu.CompilerParams(
            dimension_semantics=("parallel", "arbitrary"),
            vmem_limit_bytes=vmem_limit),
    )(x3, w1, w2)

    # Pass 2: re-stream x, multiply by the per-image scale.
    return pl.pallas_call(
        _se_scale_kernel,
        out_shape=jax.ShapeDtypeStruct((b, c, hw), x3.dtype),
        grid_spec=pltpu.PrefetchScalarGridSpec(
            num_scalar_prefetch=0,
            grid=(b, n_t),
            in_specs=[
                pl.BlockSpec((1, c, 1), lambda bi, ti: (bi, 0, 0)),
                pl.BlockSpec((1, c, thw), lambda bi, ti: (bi, 0, ti)),
            ],
            out_specs=pl.BlockSpec((1, c, thw), lambda bi, ti: (bi, 0, ti)),
        ),
        compiler_params=pltpu.CompilerParams(
            dimension_semantics=("parallel", "parallel"),
            vmem_limit_bytes=vmem_limit),
    )(scales, x3)


# --------------------------------------------------------------------------
# Wrapper
# --------------------------------------------------------------------------
def se_forward(x_nchw, w1, w2, *, max_block_bytes=_DEFAULT_MAX_BLOCK_BYTES):
    """SE block forward.

    x_nchw : (B, C, H, W)
    w1     : (C//ratio, C)  fc1 weight, PyTorch (out_features, in_features)
    w2     : (C, C//ratio)  fc2 weight, PyTorch (out_features, in_features)
    """
    b, c, h, w = x_nchw.shape
    hw = h * w
    itemsize = jnp.dtype(x_nchw.dtype).itemsize

    x3 = x_nchw.reshape(b, c, hw)                 # free reshape (collapses last dims)
    per_batch_bytes = _round_up(c, _SUBLANE) * _round_up(hw, _LANE) * itemsize

    if per_batch_bytes <= max_block_bytes:
        # ---- fused resident path ----
        max_bt = max(1, max_block_bytes // per_batch_bytes)
        if b >= 2:
            # keep >= 2 grid steps so both v7x TensorCores get work
            max_bt = min(max_bt, max(1, b // 2))
        bt = 1
        for d in range(int(min(b, max_bt)), 0, -1):
            if b % d == 0:
                bt = d
                break
        out3 = _se_fused(x3, w1, w2, bt)
    else:
        # ---- streamed two-pass path ----
        thw = max(_LANE,
                  (max_block_bytes // (_round_up(c, _SUBLANE) * itemsize))
                  // _LANE * _LANE)
        thw = min(thw, _round_up(hw, _LANE))
        out3 = _se_streamed(x3, w1, w2, thw)

    return out3.reshape(b, c, h, w)


def se_reference(x_nchw, w1, w2):
    """Pure-JAX reference matching the PyTorch module semantics."""
    b, c, _, _ = x_nchw.shape
    y = jnp.mean(x_nchw, axis=(2, 3))                 # (B, C)
    y = jnp.maximum(y @ w1.T, 0.0)                    # fc1 + ReLU
    y = jax.nn.sigmoid(y @ w2.T)                      # fc2 + Sigmoid
    return x_nchw * y.reshape(b, c, 1, 1)


if __name__ == "__main__":
    B, C, RATIO = 2, 16, 4
    C_R = C // RATIO

    key = jax.random.PRNGKey(0)
    kx, k1, k2, k3, k4 = jax.random.split(key, 5)

    w1 = jax.random.normal(k1, (C_R, C), dtype=jnp.float32) * 0.1
    w2 = jax.random.normal(k2, (C, C_R), dtype=jnp.float32) * 0.1

    # 1) fused resident path, HW a multiple of 128 (16x16 = 256)
    x = jax.random.normal(kx, (B, C, 16, 16), dtype=jnp.float32)
    ref = se_reference(x, w1, w2)
    out = jax.block_until_ready(se_forward(x, w1, w2))
    assert out.shape == (B, C, 16, 16)
    assert jnp.allclose(out, ref, atol=1e-5, rtol=1e-5), "fused path mismatch"

    # 2) fused resident path, ragged HW (7x7 = 49; no HBM padding needed)
    x2 = jax.random.normal(k3, (B, C, 7, 7), dtype=jnp.float32)
    out2 = jax.block_until_ready(se_forward(x2, w1, w2))
    assert jnp.allclose(out2, se_reference(x2, w1, w2),
                        atol=1e-5, rtol=1e-5), "ragged fused path mismatch"

    # 3) streamed two-pass path with a ragged last tile (15x20 = 300 lanes,
    #    forced tiny block budget -> 128-lane tiles, 3 tiles, last one masked)
    x3 = jax.random.normal(k4, (B, C, 15, 20), dtype=jnp.float32)
    out3 = jax.block_until_ready(se_forward(x3, w1, w2, max_block_bytes=8 * 1024))
    assert jnp.allclose(out3, se_reference(x3, w1, w2),
                        atol=1e-5, rtol=1e-5), "ragged streamed path mismatch"

    # 4) streamed two-pass path, evenly tiled (forced tiny block budget)
    out4 = jax.block_until_ready(se_forward(x, w1, w2, max_block_bytes=8 * 1024))
    assert jnp.allclose(out4, ref, atol=1e-5, rtol=1e-5), "streamed path mismatch"

    print("KERNEL_OK")
</pallas_src>

<mosaic_0001>
module attributes {stable_mosaic.version = 11 : i64} {
  func.func @_se_fused_kernel(%arg0: i32, %arg1: memref<1x16x256xf32, #tpu.memory_space<vmem>>, %arg2: memref<4x16xf32, #tpu.memory_space<vmem>>, %arg3: memref<16x4xf32, #tpu.memory_space<vmem>>, %arg4: memref<1x16x256xf32, #tpu.memory_space<vmem>>) attributes {dimension_semantics = [#tpu.dimension_semantics<parallel>], iteration_bounds = array<i64: 2>, scalar_prefetch = 0 : i64, scratch_operands = 0 : i64, tpu.core_type = #tpu.core_type<tc>, window_params = [{transform_indices = @transform_0, window_bounds = array<i64: 1, 16, 256>}, {pipeline_mode = #tpu.pipeline_mode<synchronous>, transform_indices = @transform_1, window_bounds = array<i64: 4, 16>}, {pipeline_mode = #tpu.pipeline_mode<synchronous>, transform_indices = @transform_2, window_bounds = array<i64: 16, 4>}, {transform_indices = @transform_3, window_bounds = array<i64: 1, 16, 256>}]} {
    %c0 = arith.constant 0 : index
    %c0_0 = arith.constant 0 : index
    %c0_1 = arith.constant 0 : index
    %0 = vector.load %arg1[%c0, %c0_0, %c0_1] : memref<1x16x256xf32, #tpu.memory_space<vmem>>, vector<1x16x256xf32>
    %cst = arith.constant dense<0.000000e+00> : vector<1x16xf32>
    %1 = vector.multi_reduction <add>, %0, %cst [2] : vector<1x16x256xf32> to vector<1x16xf32>
    %cst_2 = arith.constant 3.906250e-03 : f32
    %2 = vector.broadcast %cst_2 : f32 to vector<1x16xf32>
    %3 = arith.mulf %1, %2 : vector<1x16xf32>
    %c0_3 = arith.constant 0 : index
    %c0_4 = arith.constant 0 : index
    %4 = vector.load %arg2[%c0_3, %c0_4] : memref<4x16xf32, #tpu.memory_space<vmem>>, vector<4x16xf32>
    "tpu.trace_start"() <{level = 10 : i32, message = "bc,rc->br"}> : () -> ()
    %cst_5 = arith.constant dense<0.000000e+00> : vector<1x4xf32>
    %5 = tpu.matmul %3, %4, %cst_5 {dimension_numbers = #tpu.dot_dimension_numbers<[1], [1], [0], [0], [0, 0, 1, 0], [], []>} : vector<1x16xf32>, vector<4x16xf32>, vector<1x4xf32> -> vector<1x4xf32>
    "tpu.trace_stop"() : () -> ()
    %cst_6 = arith.constant 0.000000e+00 : f32
    %6 = vector.broadcast %cst_6 : f32 to vector<1x4xf32>
    %7 = arith.maximumf %5, %6 : vector<1x4xf32>
    %c0_7 = arith.constant 0 : index
    %c0_8 = arith.constant 0 : index
    %8 = vector.load %arg3[%c0_7, %c0_8] : memref<16x4xf32, #tpu.memory_space<vmem>>, vector<16x4xf32>
    "tpu.trace_start"() <{level = 10 : i32, message = "br,cr->bc"}> : () -> ()
    %cst_9 = arith.constant dense<0.000000e+00> : vector<1x16xf32>
    %9 = tpu.matmul %7, %8, %cst_9 {dimension_numbers = #tpu.dot_dimension_numbers<[1], [1], [0], [0], [0, 0, 1, 0], [], []>} : vector<1x4xf32>, vector<16x4xf32>, vector<1x16xf32> -> vector<1x16xf32>
    "tpu.trace_stop"() : () -> ()
    %10 = arith.negf %9 : vector<1x16xf32>
    %11 = math.exp %10 : vector<1x16xf32>
    %cst_10 = arith.constant 1.000000e+00 : f32
    %12 = vector.broadcast %cst_10 : f32 to vector<1x16xf32>
    %13 = arith.addf %12, %11 : vector<1x16xf32>
    %14 = arith.divf %12, %13 : vector<1x16xf32>
    %15 = vector.shape_cast %14 : vector<1x16xf32> to vector<1x16x1xf32>
    %16 = vector.broadcast %15 : vector<1x16x1xf32> to vector<1x16x256xf32>
    %17 = arith.mulf %0, %16 : vector<1x16x256xf32>
    %c0_11 = arith.constant 0 : index
    %c0_12 = arith.constant 0 : index
    %c0_13 = arith.constant 0 : index
    %18 = vector.load %arg4[%c0_11, %c0_12, %c0_13] : memref<1x16x256xf32, #tpu.memory_space<vmem>>, vector<1x16x256xf32>
    tpu.vector_store %arg4[%c0_11, %c0_12, %c0_13], %17 {strides = array<i32>} : memref<1x16x256xf32, #tpu.memory_space<vmem>>, vector<1x16x256xf32>,
    return
  }
  func.func @transform_0(%arg0: i32) -> (i32, i32, i32) {
    %c0_i32 = arith.constant 0 : i32
    %c0_i32_0 = arith.constant 0 : i32
    %c0_i32_1 = arith.constant 0 : i32
    return %arg0, %c0_i32, %c0_i32_0 : i32, i32, i32
  }
  func.func @transform_1(%arg0: i32) -> (i32, i32) {
    %c0_i32 = arith.constant 0 : i32
    %c0_i32_0 = arith.constant 0 : i32
    %c0_i32_1 = arith.constant 0 : i32
    return %c0_i32, %c0_i32_0 : i32, i32
  }
  func.func @transform_2(%arg0: i32) -> (i32, i32) {
    %c0_i32 = arith.constant 0 : i32
    %c0_i32_0 = arith.constant 0 : i32
    %c0_i32_1 = arith.constant 0 : i32
    return %c0_i32, %c0_i32_0 : i32, i32
  }
  func.func @transform_3(%arg0: i32) -> (i32, i32, i32) {
    %c0_i32 = arith.constant 0 : i32
    %c0_i32_0 = arith.constant 0 : i32
    %c0_i32_1 = arith.constant 0 : i32
    return %arg0, %c0_i32, %c0_i32_0 : i32, i32, i32
  }
}

</mosaic_0001>

<llo_original>
// kernel: tpu_custom_call.1
$region0: #{tpu_custom_call.1}
  #allocation0 [shape = 'u32[]', space=smem, size = 0x4, offset = 0x4, fixed_abs, tag = 'smem constant byte address 0x4 - core index']
  #allocation1 [shape = 'u32[144,128]{1,0:T(1,128)}', space=vmem, size = 0x12000, scoped, tag = 'internal scratch']
  %s0 = inlined_call_operand.hbm [shape: f32[2,16,256], index: 0, kind: input, shape index: {}]
  %s1 = inlined_call_operand.vmem [shape: f32[4,16], index: 1, kind: input, shape index: {}]
  %s2 = inlined_call_operand.vmem [shape: f32[16,4], index: 2, kind: input, shape index: {}]
  %s3 = inlined_call_operand.hbm [shape: f32[2,16,256], index: 3, kind: output, shape index: {}]
  %s4 = sld [smem:[#allocation0]]
  $region49: #{tpu_custom_call.1} parent=0
    _
  %s6 = ssub.s32 1, %s4
  %s7 = scalar_select 0, %s6, %s4
  $region1: #{tpu_custom_call.1} parent=0
    #allocation2 [shape = 'u8[32768]{0}', space=vmem, size = 0x8000, scoped, tag = 'input window, operand 0']
    #allocation3 [shape = 's32[2]{0}', space=sflag, size = 0x8, scoped, tag = 'scoped memory for tpu_custom_call.1']
    #allocation4 [shape = 's32[2]{0}', space=sflag, size = 0x8, scoped, tag = 'scoped memory for tpu_custom_call.1']
    #allocation5 [shape = 'u8[32768]{0}', space=vmem, size = 0x8000, scoped, tag = 'output window, operand 0']
    %8 = vsyncpa [#allocation3], 0
    %s9 = scalar_lea.sflag [#allocation3], 1
    %10 = vsyncpa %s9, 0
    %11 = vsyncpa [#allocation4], 0
    %s12 = scalar_lea.sflag [#allocation4], 1
    %13 = vsyncpa %s12, 0
    loop: start=0, step=1, limit=4
    $region2: #{tpu_custom_call.1} parent=1 // loop_pre_header
      _
    $region3: #{tpu_custom_call.1} parent=1 // loop_header
      %s15 = sphi 0, %s19
      %p16 = scmp.ge.s32.totalorder %s15, 4
      %s25 = sphi 0, %s27
      %s28 = sphi 0, %s25
      %s29 = sphi 0, %s28
      %s45 = sphi 0, %s29
      %s49 = sphi 0, %s49
      %s51 = sphi 0, %s49
      %s52 = sphi 0, %s51
      %s66 = sphi 0, %s52
      %s70 = sphi 0, %s70
      %s72 = sphi 0, %s70
      %s73 = sphi 0, %s72
      %s87 = sphi 0, %s73
      %s93 = sphi 0, %s95
      %s96 = sphi 0, %s93
      %s97 = sphi 0, %s96
      %s113 = sphi 0, %s97
    $region4: #{tpu_custom_call.1} parent=1 // loop_header_branch
      %18 = sbr.rel (%p16) target = $region8
    $region5: #{tpu_custom_call.1} parent=1 // loop_body
      %s20 = ssub.s32 %s15, 1
      %s21 = ssub.s32 %s15, 2
      %s22 = sadd.s32 %s15, 1
      %s23 = ssub.s32 %s15, %s22
      %p24 = scmp.eq.s32.totalorder %s23, 0
      %s26 = sadd.s32 %s25, 1
      %s27 = scalar_select %p24, %s25, %s26
      %p30 = pneg %p24
      %p31 = scmp.eq.s32.totalorder %s15, 1
      %p32 = por %p30, %p31
      %p33 = scmp.ne.s32.totalorder %s25, %s28
      %p34 = scmp.eq.s32.totalorder %s15, 0
      %p35 = por %p33, %p34
      %p36 = scmp.ne.s32.totalorder %s25, %s28
      %p37 = scmp.eq.s32.totalorder %s20, 1
      %p38 = por %p36, %p37
      %p39 = scmp.ne.s32.totalorder %s28, %s29
      %p40 = scmp.eq.s32.totalorder %s20, 0
      %p41 = por %p39, %p40
      %p42 = scmp.ne.s32.totalorder %s28, %s29
      %p43 = scmp.eq.s32.totalorder %s21, 1
      %p44 = por %p42, %p43
      %p46 = scmp.ne.s32.totalorder %s29, %s45
      %p47 = scmp.eq.s32.totalorder %s21, 0
      %p48 = por %p46, %p47
      %s50 = sadd.s32 %s49, 1
      %p53 = scmp.eq.s32.totalorder %s15, 1
      %p54 = scmp.ne.s32.totalorder %s49, %s51
      %p55 = scmp.eq.s32.totalorder %s15, 0
      %p56 = por %p54, %p55
      %p57 = scmp.ne.s32.totalorder %s49, %s51
      %p58 = scmp.eq.s32.totalorder %s20, 1
      %p59 = por %p57, %p58
      %p60 = scmp.ne.s32.totalorder %s51, %s52
      %p61 = scmp.eq.s32.totalorder %s20, 0
      %p62 = por %p60, %p61
      %p63 = scmp.ne.s32.totalorder %s51, %s52
      %p64 = scmp.eq.s32.totalorder %s21, 1
      %p65 = por %p63, %p64
      %p67 = scmp.ne.s32.totalorder %s52, %s66
      %p68 = scmp.eq.s32.totalorder %s21, 0
      %p69 = por %p67, %p68
      %s71 = sadd.s32 %s70, 1
      %p74 = scmp.eq.s32.totalorder %s15, 1
      %p75 = scmp.ne.s32.totalorder %s70, %s72
      %p76 = scmp.eq.s32.totalorder %s15, 0
      %p77 = por %p75, %p76
      %p78 = scmp.ne.s32.totalorder %s70, %s72
      %p79 = scmp.eq.s32.totalorder %s20, 1
      %p80 = por %p78, %p79
      %p81 = scmp.ne.s32.totalorder %s72, %s73
      %p82 = scmp.eq.s32.totalorder %s20, 0
      %p83 = por %p81, %p82
      %p84 = scmp.ne.s32.totalorder %s72, %s73
      %p85 = scmp.eq.s32.totalorder %s21, 1
      %p86 = por %p84, %p85
      %p88 = scmp.ne.s32.totalorder %s73, %s87
      %p89 = scmp.eq.s32.totalorder %s21, 0
      %p90 = por %p88, %p89
      %s91 = ssub.s32 %s15, %s22
      %p92 = scmp.eq.s32.totalorder %s91, 0
      %s94 = sadd.s32 %s93, 1
      %s95 = scalar_select %p92, %s93, %s94
      %p98 = pneg %p92
      %p99 = scmp.eq.s32.totalorder %s15, 1
      %p100 = por %p98, %p99
      %p101 = scmp.ne.s32.totalorder %s93, %s96
      %p102 = scmp.eq.s32.totalorder %s15, 0
      %p103 = por %p101, %p102
      %p104 = scmp.ne.s32.totalorder %s93, %s96
      %p105 = scmp.eq.s32.totalorder %s20, 1
      %p106 = por %p104, %p105
      %p107 = scmp.ne.s32.totalorder %s96, %s97
      %p108 = scmp.eq.s32.totalorder %s20, 0
      %p109 = por %p107, %p108
      %p110 = scmp.ne.s32.totalorder %s96, %s97
      %p111 = scmp.eq.s32.totalorder %s21, 1
      %p112 = por %p110, %p111
      %p114 = scmp.ne.s32.totalorder %s97, %s113
      %p115 = scmp.eq.s32.totalorder %s21, 0
      %p116 = por %p114, %p115
      %p117 = scmp.le.s32.totalorder 1, %s15
      %p118 = scmp.lt.s32.totalorder %s15, 3
      %p119 = pnand %p117, %p118
      %p120 = pneg %p119
      // Predicated region
      $region9: #{tpu_custom_call.1} parent=5 // pred_check
        _
      $region10: #{tpu_custom_call.1} parent=5 // pred_check_branch
        %122 = sbr.rel (%p119) target = $region12
      $region11: #{tpu_custom_call.1} parent=5 // pred_region
        %s123 = ssub.s32 %s15, 1
        // Predicated region
        $region13: #{tpu_custom_call.1} parent=11 // pred_check
          %p124 = pneg %p62
        $region14: #{tpu_custom_call.1} parent=11 // pred_check_branch
          %126 = sbr.rel (%p124) target = $region16
        $region15: #{tpu_custom_call.1} parent=11 // pred_region
          _
        $region16: #{tpu_custom_call.1} parent=11 // pred_fallthru
          _
        // Predicated region
        $region17: #{tpu_custom_call.1} parent=11 // pred_check
          %p127 = pneg %p83
        $region18: #{tpu_custom_call.1} parent=11 // pred_check_branch
          %129 = sbr.rel (%p127) target = $region20
        $region19: #{tpu_custom_call.1} parent=11 // pred_region
          _
        $region20: #{tpu_custom_call.1} parent=11 // pred_fallthru
          _
      $region12: #{tpu_custom_call.1} parent=5 // pred_fallthru
        _
      %p130 = scmp.lt.s32.totalorder %s15, 2
      // Predicated region
      $region21: #{tpu_custom_call.1} parent=5 // pred_check
        %p131 = pneg %p130
      $region22: #{tpu_custom_call.1} parent=5 // pred_check_branch
        %133 = sbr.rel (%p131) target = $region24
      $region23: #{tpu_custom_call.1} parent=5 // pred_region
        // Predicated region
        $region25: #{tpu_custom_call.1} parent=23 // pred_check
          %p134 = pneg %p35
        $region26: #{tpu_custom_call.1} parent=23 // pred_check_branch
          %136 = sbr.rel (%p134) target = $region28
        $region27: #{tpu_custom_call.1} parent=23 // pred_region
          %s137 = sand.u32 %s25, 1
          %s138 = scalar_lea.sflag [#allocation3], %s137
          %s139 = sand.u32 %s25, 1
          %s140 = smul.addr %s139, 32
          %s141 = scalar_lea.vmem [#allocation2], %s140
          %s143 = ssub.s32 512, 512
          %144 = vsyncadd %s138, %s143
          %s145 = smul.addr %s15, 4
          %s146 = smul.addr %s145, 128
          %s147 = scalar_lea.hbm %s0, %s146
          %s148 = sshll.u32 %s141, 4
          %s149 = int_to_ptr.vmem [resolvable:$true] %s148
          %154 = dma.hbm_to_vmem [thread:$0]  %s147, 512, %s149, %s138, 256, 256, 16
        $region28: #{tpu_custom_call.1} parent=23 // pred_fallthru
          _
      $region24: #{tpu_custom_call.1} parent=5 // pred_fallthru
        _
      %p155 = scmp.le.s32.totalorder 1, %s15
      %p156 = scmp.lt.s32.totalorder %s15, 3
      %p157 = pnand %p155, %p156
      %p158 = pneg %p157
      // Predicated region
      $region29: #{tpu_custom_call.1} parent=5 // pred_check
        _
      $region30: #{tpu_custom_call.1} parent=5 // pred_check_branch
        %160 = sbr.rel (%p157) target = $region32
      $region31: #{tpu_custom_call.1} parent=5 // pred_region
        %s161 = ssub.s32 %s15, 1
        %s162 = sand.u32 %s28, 1
        %s163 = scalar_lea.sflag [#allocation3], %s162
        %s164 = sand.u32 %s28, 1
        %s165 = smul.addr %s164, 32
        %s166 = scalar_lea.vmem [#allocation2], %s165
        // Predicated region
        $region33: #{tpu_custom_call.1} parent=31 // pred_check
          %p167 = pneg %p41
        $region34: #{tpu_custom_call.1} parent=31 // pred_check_branch
          %169 = sbr.rel (%p167) target = $region36
        $region35: #{tpu_custom_call.1} parent=31 // pred_region
          %170 = dma.done %s163, 512
        $region36: #{tpu_custom_call.1} parent=31 // pred_fallthru
          _
        %s171 = sand.u32 %s28, 1
        %s172 = scalar_lea.sflag [#allocation3], %s171
        %s173 = sand.u32 %s28, 1
        %s174 = smul.addr %s173, 32
        %s175 = scalar_lea.vmem [#allocation2], %s174
        %p176 = pneg %p41
        %p177 = pneg %p38
        %p178 = pneg %p62
        %p179 = pneg %p59
        %p180 = pneg %p83
        %p181 = pneg %p80
        %p182 = pneg %p109
        %p183 = pneg %p106
        %s184 = sand.u32 %s96, 1
        %s185 = scalar_lea.sflag [#allocation4], %s184
        %s186 = sand.u32 %s96, 1
        %s187 = smul.addr %s186, 32
        %s188 = scalar_lea.vmem [#allocation5], %s187
        %v189 = vld [vmem:[%s166] sm:$0xff]
        %v190 = vld [vmem:[%s166 + $0x8] sm:$0xff]
        %v191 = vld [vmem:[%s166 + $0x10] sm:$0xff]
        %v192 = vld [vmem:[%s166 + $0x18] sm:$0xff]
        %v193 = vadd.f32 %v189, %v190
        %194 = vadd.xlane.f32.xlu0 %v193
        %v195 = vpop.xlane.xlu0 %194
        %v196 = vadd.f32 %v191, %v192
        %197 = vadd.xlane.f32.xlu0 %v196
        %v198 = vpop.xlane.xlu0 %197
        %v199 = vmul.f32 %v195, 0.00390625
        %v200 = vmul.f32 %v198, 0.00390625
        %v201 = vld [vmem:[%s1] sm:$0xf]
        %v204 = vlaneseq
        %v205 = vand.u32 %v204, 127
        %v206 = vlaneseq
        %v207 = vshrl.u32 %v206, 7
        %v208 = vsub.s32 %v205, %v207
        %v209 = vrot.slane %v199, %v208
        %v210 = vadd.s32 %v205, 4294967288
        %v211 = vlaneseq
        %v212 = vshrl.u32 %v211, 7
        %v213 = vsub.s32 %v210, %v212
        %v214 = vrot.slane %v200, %v213
        %vm215 = vcmask 130112
        %v216 = vsel %vm215, %v214, %v209
        %vm217 = vcmask 130048
        %v218 = vsel %vm217, %v216, 0
        %v221 = vsel %vm217, %v201, 0
        %223 = vmatprep.subr.mxu0 0.0
        %224 = vmatpush1.xpose.msra.mxu0 0.0
        %225 = vmatprep.subr.mxu0 0.0
        %226 = vmatpush1.xpose.msra.mxu0 0.0
        %227 = vmatprep.subr.mxu0 0.0
        %228 = vmatpush1.xpose.msra.mxu0 0.0
        %229 = vmatprep.subr.mxu0 0.0
        %230 = vmatpush1.xpose.msra.mxu0 0.0
        %231 = vmatprep.subr.mxu0 0.0
        %232 = vmatpush1.xpose.msra.mxu0 0.0
        %233 = vmatprep.subr.mxu0 0.0
        %234 = vmatpush1.xpose.msra.mxu0 0.0
        %235 = vmatprep.subr.mxu0 0.0
        %236 = vmatpush1.xpose.msra.mxu0 0.0
        %237 = vmatprep.subr.mxu0 0.0
        %238 = vmatpush1.xpose.msra.mxu0 0.0
        %239 = vmatprep.subr.mxu0 0.0
        %240 = vmatpush1.xpose.msra.mxu0 0.0
        %241 = vmatprep.subr.mxu0 0.0
        %242 = vmatpush1.xpose.msra.mxu0 0.0
        %243 = vmatprep.subr.mxu0 0.0
        %244 = vmatpush1.xpose.msra.mxu0 0.0
        %245 = vmatprep.subr.mxu0 0.0
        %246 = vmatpush1.xpose.msra.mxu0 0.0
        %247 = vmatprep.subr.mxu0 0.0
        %248 = vmatpush1.xpose.msra.mxu0 0.0
        %249 = vmatprep.subr.mxu0 0.0
        %250 = vmatpush1.xpose.msra.mxu0 0.0
        %251 = vmatprep.subr.mxu0 0.0
        %252 = vmatpush1.xpose.msra.mxu0 0.0
        %253 = vmatprep.subr.mxu0 0.0
        %254 = vmatpush1.xpose.msra.mxu0 %v221
        %255 = vmatprep.subr.mxu0 0.0
        %256 = vmatpush2.xpose.msra.mxu0 0.0
        %257 = vmatprep.subr.mxu0 0.0
        %258 = vmatpush2.xpose.msra.mxu0 0.0
        %259 = vmatprep.subr.mxu0 0.0
        %260 = vmatpush2.xpose.msra.mxu0 0.0
        %261 = vmatprep.subr.mxu0 0.0
        %262 = vmatpush2.xpose.msra.mxu0 0.0
        %263 = vmatprep.subr.mxu0 0.0
        %264 = vmatpush2.xpose.msra.mxu0 0.0
        %265 = vmatprep.subr.mxu0 0.0
        %266 = vmatpush2.xpose.msra.mxu0 0.0
        %267 = vmatprep.subr.mxu0 0.0
        %268 = vmatpush2.xpose.msra.mxu0 0.0
        %269 = vmatprep.subr.mxu0 0.0
        %270 = vmatpush2.xpose.msra.mxu0 0.0
        %271 = vmatprep.subr.mxu0 0.0
        %272 = vmatpush2.xpose.msra.mxu0 0.0
        %273 = vmatprep.subr.mxu0 0.0
        %274 = vmatpush2.xpose.msra.mxu0 0.0
        %275 = vmatprep.subr.mxu0 0.0
        %276 = vmatpush2.xpose.msra.mxu0 0.0
        %277 = vmatprep.subr.mxu0 0.0
        %278 = vmatpush2.xpose.msra.mxu0 0.0
        %279 = vmatprep.subr.mxu0 0.0
        %280 = vmatpush2.xpose.msra.mxu0 0.0
        %281 = vmatprep.subr.mxu0 0.0
        %282 = vmatpush2.xpose.msra.mxu0 0.0
        %283 = vmatprep.subr.mxu0 0.0
        %284 = vmatpush2.xpose.msra.mxu0 0.0
        %285 = vmatprep.subr.mxu0 0.0
        %286 = vmatpush2.xpose.msra.mxu0 0.0
        %287 = vmatprep.mubr.f32.mxu0 0.0
        %288 = vmatmul.mubr.f32.gmra.mxu0 %v218
        %v289 = vpop.f32.mrf.mxu0
        %v290 = vadd.f32 0.0, %v289
        %v291 = vpop.f32.mrf.mxu0
        %292 = vdwg.mxu0
        %v293 = vmax.f32 %v290, 0.0
        %v294 = vld [vmem:[%s2] sm:$0xff]
        %v295 = vld [vmem:[%s2 + $0x8] sm:$0xff]
        %vm296 = vcmask 31744
        %v298 = vsel %vm296, %v293, 0
        %v301 = vsel %vm296, %v294, 0
        %v304 = vsel %vm296, %v295, 0
        %306 = vmatprep.subr.mxu0 0.0
        %307 = vmatpush1.xpose.msra.mxu0 0.0
        %308 = vmatprep.subr.mxu0 0.0
        %309 = vmatpush1.xpose.msra.mxu0 0.0
        %310 = vmatprep.subr.mxu0 0.0
        %311 = vmatpush1.xpose.msra.mxu0 0.0
        %312 = vmatprep.subr.mxu0 0.0
        %313 = vmatpush1.xpose.msra.mxu0 0.0
        %314 = vmatprep.subr.mxu0 0.0
        %315 = vmatpush1.xpose.msra.mxu0 0.0
        %316 = vmatprep.subr.mxu0 0.0
        %317 = vmatpush1.xpose.msra.mxu0 0.0
        %318 = vmatprep.subr.mxu0 0.0
        %319 = vmatpush1.xpose.msra.mxu0 0.0
        %320 = vmatprep.subr.mxu0 0.0
        %321 = vmatpush1.xpose.msra.mxu0 0.0
        %322 = vmatprep.subr.mxu0 0.0
        %323 = vmatpush1.xpose.msra.mxu0 0.0
        %324 = vmatprep.subr.mxu0 0.0
        %325 = vmatpush1.xpose.msra.mxu0 0.0
        %326 = vmatprep.subr.mxu0 0.0
        %327 = vmatpush1.xpose.msra.mxu0 0.0
        %328 = vmatprep.subr.mxu0 0.0
        %329 = vmatpush1.xpose.msra.mxu0 0.0
        %330 = vmatprep.subr.mxu0 0.0
        %331 = vmatpush1.xpose.msra.mxu0 0.0
        %332 = vmatprep.subr.mxu0 0.0
        %333 = vmatpush1.xpose.msra.mxu0 0.0
        %334 = vmatprep.subr.mxu0 0.0
        %335 = vmatpush1.xpose.msra.mxu0 %v304
        %336 = vmatprep.subr.mxu0 0.0
        %337 = vmatpush1.xpose.msra.mxu0 %v301
        %338 = vmatprep.subr.mxu0 0.0
        %339 = vmatpush2.xpose.msra.mxu0 0.0
        %340 = vmatprep.subr.mxu0 0.0
        %341 = vmatpush2.xpose.msra.mxu0 0.0
        %342 = vmatprep.subr.mxu0 0.0
        %343 = vmatpush2.xpose.msra.mxu0 0.0
        %344 = vmatprep.subr.mxu0 0.0
        %345 = vmatpush2.xpose.msra.mxu0 0.0
        %346 = vmatprep.subr.mxu0 0.0
        %347 = vmatpush2.xpose.msra.mxu0 0.0
        %348 = vmatprep.subr.mxu0 0.0
        %349 = vmatpush2.xpose.msra.mxu0 0.0
        %350 = vmatprep.subr.mxu0 0.0
        %351 = vmatpush2.xpose.msra.mxu0 0.0
        %352 = vmatprep.subr.mxu0 0.0
        %353 = vmatpush2.xpose.msra.mxu0 0.0
        %354 = vmatprep.subr.mxu0 0.0
        %355 = vmatpush2.xpose.msra.mxu0 0.0
        %356 = vmatprep.subr.mxu0 0.0
        %357 = vmatpush2.xpose.msra.mxu0 0.0
        %358 = vmatprep.subr.mxu0 0.0
        %359 = vmatpush2.xpose.msra.mxu0 0.0
        %360 = vmatprep.subr.mxu0 0.0
        %361 = vmatpush2.xpose.msra.mxu0 0.0
        %362 = vmatprep.subr.mxu0 0.0
        %363 = vmatpush2.xpose.msra.mxu0 0.0
        %364 = vmatprep.subr.mxu0 0.0
        %365 = vmatpush2.xpose.msra.mxu0 0.0
        %366 = vmatprep.subr.mxu0 0.0
        %367 = vmatpush2.xpose.msra.mxu0 0.0
        %368 = vmatprep.subr.mxu0 0.0
        %369 = vmatpush2.xpose.msra.mxu0 0.0
        %370 = vmatprep.mubr.f32.mxu0 0.0
        %371 = vmatmul.mubr.f32.gmra.mxu0 %v298
        %v372 = vpop.f32.mrf.mxu0
        %v373 = vadd.f32 0.0, %v372
        %v374 = vpop.f32.mrf.mxu0
        %375 = vdwg.mxu0
        %v376 = vxor.u32 %v373, 2147483648
        %v377 = vmul.f32 %v376, 1.442695
        %v378 = vpow.pop %v377
        %v379 = vadd.f32 %v378, 1.0
        %v380 = vrcp.pop %v379
        %v381 = vmul.f32 1.0, %v380
        %v382 = vlaneseq
        %v383 = vshrl.u32 %v382, 7
        %v384 = vsub.s32 0, %v383
        %v385 = vrot.slane %v381, %v384
        %387 = vbcast.lane.b32.xlu0 %v385, 256
        %v388 = vpop.permute.xlu0 %387
        %s390 = sor.u32 256, 8
        %391 = vbcast.lane.b32.xlu0 %v385, %s390
        %v392 = vpop.permute.xlu0 %391
        %v393 = vmul.f32 %v189, %v388
        %v394 = vmul.f32 %v190, %v388
        %v395 = vmul.f32 %v191, %v392
        %v396 = vmul.f32 %v192, %v392
        %397 = vst [vmem:[%s188] sm:$0xff] %v393
        %398 = vst [vmem:[%s188 + $0x8] sm:$0xff] %v394
        %399 = vst [vmem:[%s188 + $0x10] sm:$0xff] %v395
        %400 = vst [vmem:[%s188 + $0x18] sm:$0xff] %v396
        %s401 = sand.u32 %s96, 1
        %s402 = scalar_lea.sflag [#allocation4], %s401
        %s403 = sand.u32 %s96, 1
        %s404 = smul.addr %s403, 32
        %s405 = scalar_lea.vmem [#allocation5], %s404
        // Predicated region
        $region37: #{tpu_custom_call.1} parent=31 // pred_check
          %p406 = pneg %p106
        $region38: #{tpu_custom_call.1} parent=31 // pred_check_branch
          %408 = sbr.rel (%p406) target = $region40
        $region39: #{tpu_custom_call.1} parent=31 // pred_region
          %s410 = ssub.s32 512, 512
          %411 = vsyncadd %s402, %s410
          %s412 = smul.addr %s20, 4
          %s413 = smul.addr %s412, 128
          %s414 = scalar_lea.hbm %s3, %s413
          %s415 = sshll.u32 %s405, 4
          %s416 = int_to_ptr.vmem [resolvable:$true] %s415
          %421 = dma.vmem_to_hbm [thread:$0]  %s416, 512, %s414, %s402, 256, 256, 16
        $region40: #{tpu_custom_call.1} parent=31 // pred_fallthru
          _
      $region32: #{tpu_custom_call.1} parent=5 // pred_fallthru
        _
      %p422 = scmp.le.s32.totalorder 2, %s15
      // Predicated region
      $region41: #{tpu_custom_call.1} parent=5 // pred_check
        %p423 = pneg %p422
      $region42: #{tpu_custom_call.1} parent=5 // pred_check_branch
        %425 = sbr.rel (%p423) target = $region44
      $region43: #{tpu_custom_call.1} parent=5 // pred_region
        %s426 = ssub.s32 %s15, 2
        // Predicated region
        $region45: #{tpu_custom_call.1} parent=43 // pred_check
          %p427 = pneg %p112
        $region46: #{tpu_custom_call.1} parent=43 // pred_check_branch
          %429 = sbr.rel (%p427) target = $region48
        $region47: #{tpu_custom_call.1} parent=43 // pred_region
          %s430 = sand.u32 %s97, 1
          %s431 = scalar_lea.sflag [#allocation4], %s430
          %s432 = sand.u32 %s97, 1
          %s433 = smul.addr %s432, 32
          %s434 = scalar_lea.vmem [#allocation5], %s433
          %435 = dma.done %s431, 512
        $region48: #{tpu_custom_call.1} parent=43 // pred_fallthru
          _
      $region44: #{tpu_custom_call.1} parent=5 // pred_fallthru
        _
    $region6: #{tpu_custom_call.1} parent=1 // loop_footer
      %s19 = sadd.s32 1, %s15
    $region7: #{tpu_custom_call.1} parent=1 // loop_footer_branch
      %14 = sbr.rel target = $region3
    $region8: #{tpu_custom_call.1} parent=1 // loop_exit
      _
    %436 = vsyncpa [#allocation3], 1
    %s437 = scalar_lea.sflag [#allocation3], 1
    %438 = vsyncpa %s437, 1
    %439 = vsyncpa [#allocation4], 1
    %s440 = scalar_lea.sflag [#allocation4], 1
    %441 = vsyncpa %s440, 1

</llo_original>
